<compile_context>
chip_gen: v7x
topology: tpu7x:2x2x1
jax: 0.10.0
libtpu: 0.0.40
codegen_flags: <defaults>
</compile_context>

<pallas_src>
import functools

import jax
import jax.numpy as jnp
from jax.experimental import pallas as pl
from jax.experimental.pallas import tpu as pltpu

_LANE = 128
_SUBLANE = 8
_MIN_GRID_STEPS = 4  # keep the parallel axis shardable across v7x's 2 TensorCores


def _round_up(a: int, m: int) -> int:
    return ((a + m - 1) // m) * m


@functools.lru_cache(maxsize=1)
def _vmem_budget():
    """(target_block_bytes, vmem_limit_bytes), tuned per TPU generation."""
    block = 4 * 1024 * 1024          # safe fallback: 16 MiB live w/ double buffering
    limit = 32 * 1024 * 1024
    try:
        vmem = int(getattr(pltpu.get_tpu_info(), "vmem_capacity_bytes", 0) or 0)
        if vmem > 0:
            # in+out, each double-buffered => ~4x block bytes live; keep >=25%
            # of physical VMEM as headroom for compiler scratch.
            block = min(8 * 1024 * 1024, max(2 * 1024 * 1024, vmem // 8))
            limit = min(vmem - vmem // 4, 4 * block + 8 * 1024 * 1024)
    except Exception:
        pass
    return block, limit


def _swish_kernel(x_ref, o_ref):
    # f(x) = x * sigmoid(x), sigmoid written as 0.5*tanh(0.5*x)+0.5 so the
    # transcendental cost is one EUP push (no exp + full-precision divide).
    # Math stays in the native dtype: bf16 EUP/VPU on v6e/v7x is native;
    # Mosaic upcasts automatically on v5e.  The ragged last grid block keeps
    # the plain masked store below (do not convert to unmasked pltpu.store).
    x = x_ref[...]
    sig = 0.5 * jnp.tanh(0.5 * x) + 0.5
    o_ref[...] = (x * sig).astype(o_ref.dtype)


def _swish_jnp(x):
    """Plain-JAX swish for tiny tails / sub-128-element tensors."""
    xf = x.astype(jnp.float32)
    return (xf * jax.nn.sigmoid(xf)).astype(x.dtype)


def _choose_width(n: int) -> int:
    """Lane-dense width for an n-element slab (n % 128 == 0).

    Prefers widths that keep >= 8 rows so small activations fill sublanes.
    """
    for w in (2048, 1024, 512, 256, 128):
        if n % w == 0 and n // w >= _SUBLANE:
            return w
    return _LANE


def _swish_slab(slab: jax.Array) -> jax.Array:
    """Run the swish kernel over a (rows, w) lane-dense slab."""
    rows, w = slab.shape
    itemsize = jnp.dtype(slab.dtype).itemsize
    # Packed-sublane multiple: 8 (f32), 16 (bf16/f16), 32 (int8/fp8).
    sub_mult = _SUBLANE * max(1, 4 // itemsize)
    block_bytes, vmem_limit = _vmem_budget()

    if rows <= sub_mult:
        tr = rows                                     # full-extent block (legal)
    else:
        target_rows = max(
            sub_mult, ((block_bytes // (w * itemsize)) // sub_mult) * sub_mult
        )
        # Cap block rows so the grid keeps >= _MIN_GRID_STEPS steps (megacore).
        cap = max(sub_mult, _round_up(pl.cdiv(rows, _MIN_GRID_STEPS), sub_mult))
        tr = max(sub_mult, min(target_rows, cap, (rows // sub_mult) * sub_mult))

    grid = (pl.cdiv(rows, tr),)
    return pl.pallas_call(
        _swish_kernel,
        out_shape=jax.ShapeDtypeStruct((rows, w), slab.dtype),
        grid=grid,
        in_specs=[pl.BlockSpec((tr, w), lambda i: (i, 0))],
        out_specs=pl.BlockSpec((tr, w), lambda i: (i, 0)),
        input_output_aliases={0: 0},                  # elementwise: in-place write
        compiler_params=pltpu.CompilerParams(
            dimension_semantics=("parallel",),
            vmem_limit_bytes=vmem_limit,
        ),
    )(slab)


def lambda_swish(x: jax.Array) -> jax.Array:
    """Apply f(x) = x * sigmoid(x) elementwise via a Pallas TPU kernel."""
    orig_shape = x.shape
    n = x.size
    if n == 0:
        return x

    n_main = (n // _LANE) * _LANE
    if n_main == 0:
        # Fewer than 128 elements: a kernel launch is pure overhead.
        return jnp.reshape(_swish_jnp(jnp.reshape(x, (n,))), orig_shape)

    if n_main == n:
        # Common case: one pure streaming pass, no extra copies.
        w = _choose_width(n)
        out = _swish_slab(jnp.reshape(x, (n // w, w)))
        return jnp.reshape(out, orig_shape)

    # Ragged element count: kernel on the aligned prefix, plain jnp on the tiny
    # (<128-element) tail.  Avoids the old whole-tensor pad/slice (3x traffic).
    flat = jnp.reshape(x, (n,))
    w = _choose_width(n_main)
    main_out = _swish_slab(jnp.reshape(flat[:n_main], (n_main // w, w)))
    tail_out = _swish_jnp(flat[n_main:])
    out = jnp.concatenate([jnp.reshape(main_out, (n_main,)), tail_out])
    return jnp.reshape(out, orig_shape)


def lambda_module(x: jax.Array) -> jax.Array:
    """Pallas equivalent of Lambda(lambda x: x * torch.sigmoid(x)).forward(x)."""
    # TODO(synk): Lambda(f) is generic over f; only the canonical swish
    # instantiation used in odefunc.py is implemented as a kernel.
    return lambda_swish(x)


if __name__ == "__main__":
    key = jax.random.PRNGKey(0)

    # Small NCHW input consistent with how Lambda is used inside ODE nets.
    x = jax.random.normal(key, (2, 4, 16, 16), dtype=jnp.float32)
    out = jax.block_until_ready(lambda_module(x))
    ref = x * jax.nn.sigmoid(x)
    assert out.shape == x.shape and out.dtype == x.dtype
    assert jnp.max(jnp.abs(out - ref)) < 1e-4

    # Larger input: exercises the multi-step parallel grid / row-block cap.
    xl = jax.random.normal(jax.random.PRNGKey(3), (2, 16, 32, 32), dtype=jnp.float32)
    outl = jax.block_until_ready(lambda_module(xl))
    refl = xl * jax.nn.sigmoid(xl)
    assert outl.shape == xl.shape and jnp.max(jnp.abs(outl - refl)) < 1e-4

    # Ragged element count >= 128: aligned-prefix kernel + jnp tail path.
    x2 = jax.random.normal(jax.random.PRNGKey(1), (5, 7, 11), dtype=jnp.float32)
    out2 = jax.block_until_ready(lambda_module(x2))
    ref2 = x2 * jax.nn.sigmoid(x2)
    assert out2.shape == x2.shape and out2.dtype == x2.dtype
    assert jnp.max(jnp.abs(out2 - ref2)) < 1e-4

    # Tiny (<128 element) tensor: plain-jnp fallback path.
    x3 = jax.random.normal(jax.random.PRNGKey(4), (3, 5, 7), dtype=jnp.float32)
    out3 = jax.block_until_ready(lambda_module(x3))
    ref3 = x3 * jax.nn.sigmoid(x3)
    assert out3.shape == x3.shape and jnp.max(jnp.abs(out3 - ref3)) < 1e-4

    # bf16 path: native-dtype tanh-sigmoid on v6e/v7x.
    x4 = jax.random.normal(jax.random.PRNGKey(2), (2, 4, 16, 16), dtype=jnp.bfloat16)
    out4 = jax.block_until_ready(lambda_module(x4))
    x4f = x4.astype(jnp.float32)
    ref4 = x4f * jax.nn.sigmoid(x4f)
    assert out4.shape == x4.shape and out4.dtype == x4.dtype
    assert jnp.max(jnp.abs(out4.astype(jnp.float32) - ref4)) < 5e-2

    print("KERNEL_OK")
</pallas_src>

<mosaic_0001>
module attributes {stable_mosaic.version = 11 : i64} {
  func.func @_swish_kernel(%arg0: i32, %arg1: memref<8x256xf32, #tpu.memory_space<vmem>>, %arg2: memref<8x256xf32, #tpu.memory_space<vmem>>) attributes {dimension_semantics = [#tpu.dimension_semantics<parallel>], iteration_bounds = array<i64: 1>, scalar_prefetch = 0 : i64, scratch_operands = 0 : i64, tpu.core_type = #tpu.core_type<tc>, window_params = [{transform_indices = @transform_0, window_bounds = array<i64: 8, 256>}, {transform_indices = @transform_1, window_bounds = array<i64: 8, 256>}]} {
    %c0 = arith.constant 0 : index
    %c0_0 = arith.constant 0 : index
    %0 = vector.load %arg1[%c0, %c0_0] : memref<8x256xf32, #tpu.memory_space<vmem>>, vector<8x256xf32>
    %cst = arith.constant 5.000000e-01 : f32
    %1 = vector.broadcast %cst : f32 to vector<8x256xf32>
    %2 = arith.mulf %1, %0 : vector<8x256xf32>
    %3 = math.tanh %2 : vector<8x256xf32>
    %cst_1 = arith.constant 5.000000e-01 : f32
    %4 = vector.broadcast %cst_1 : f32 to vector<8x256xf32>
    %5 = arith.mulf %4, %3 : vector<8x256xf32>
    %cst_2 = arith.constant 5.000000e-01 : f32
    %6 = vector.broadcast %cst_2 : f32 to vector<8x256xf32>
    %7 = arith.addf %5, %6 : vector<8x256xf32>
    %8 = arith.mulf %0, %7 : vector<8x256xf32>
    %c0_3 = arith.constant 0 : index
    %c0_4 = arith.constant 0 : index
    %9 = vector.load %arg2[%c0_3, %c0_4] : memref<8x256xf32, #tpu.memory_space<vmem>>, vector<8x256xf32>
    tpu.vector_store %arg2[%c0_3, %c0_4], %8 {strides = array<i32>} : memref<8x256xf32, #tpu.memory_space<vmem>>, vector<8x256xf32>,
    return
  }
  func.func @transform_0(%arg0: i32) -> (i32, i32) {
    %c0_i32 = arith.constant 0 : i32
    %c0_i32_0 = arith.constant 0 : i32
    return %arg0, %c0_i32 : i32, i32
  }
  func.func @transform_1(%arg0: i32) -> (i32, i32) {
    %c0_i32 = arith.constant 0 : i32
    %c0_i32_0 = arith.constant 0 : i32
    return %arg0, %c0_i32 : i32, i32
  }
}

</mosaic_0001>

<llo_original>
// kernel: tpu_custom_call.1
$region0: #{tpu_custom_call.1}
  #allocation0 [shape = 'u32[]', space=smem, size = 0x4, offset = 0x4, fixed_abs, tag = 'smem constant byte address 0x4 - core index']
  #allocation1 [shape = 'u32[144,128]{1,0:T(1,128)}', space=vmem, size = 0x12000, scoped, tag = 'internal scratch']
  %s0 = inlined_call_operand.hbm [shape: f32[8,256], index: 0, kind: input, shape index: {}, may-alias: {0,1}]
  %s1 = inlined_call_operand.hbm [shape: f32[8,256], index: 1, kind: output, shape index: {}, may-alias: {0,1}]
  %s2 = sld [smem:[#allocation0]]
  $region18: #{tpu_custom_call.1} parent=0
    _
  %s4 = ssub.s32 1, %s2
  %s5 = scalar_select 0, %s4, %s2
  $region1: #{tpu_custom_call.1} parent=0
    #allocation2 [shape = 'u8[8192]{0}', space=vmem, size = 0x2000, scoped, tag = 'input window, operand 0, single buffered']
    #allocation3 [shape = 's32[1]{0}', space=sflag, size = 0x4, scoped, tag = 'scoped memory for tpu_custom_call.1']
    #allocation4 [shape = 's32[1]{0}', space=sflag, size = 0x4, scoped, tag = 'scoped memory for tpu_custom_call.1']
    #allocation5 [shape = 'u8[8192]{0}', space=vmem, size = 0x2000, scoped, tag = 'output window, operand 0, single buffered']
    %6 = vsyncpa [#allocation3], 0
    %7 = vsyncpa [#allocation4], 0
    // Predicated region
    $region2: #{tpu_custom_call.1} parent=1 // pred_check
      _
    $region3: #{tpu_custom_call.1} parent=1 // pred_check_branch
      %9 = sbr.rel (0) target = $region5
    $region4: #{tpu_custom_call.1} parent=1 // pred_region
      %s11 = ssub.s32 256, 256
      %12 = vsyncadd [#allocation3], %s11
      %s14 = sshll.u32 [#allocation2], 4
      %s15 = int_to_ptr.vmem [resolvable:$true] %s14
      %17 = dma.hbm_to_vmem [thread:$0]  %s0, 256, %s15, [#allocation3]
    $region5: #{tpu_custom_call.1} parent=1 // pred_fallthru
      _
    // Predicated region
    $region6: #{tpu_custom_call.1} parent=1 // pred_check
      _
    $region7: #{tpu_custom_call.1} parent=1 // pred_check_branch
      %19 = sbr.rel (0) target = $region9
    $region8: #{tpu_custom_call.1} parent=1 // pred_region
      %20 = dma.done [#allocation3], 256
    $region9: #{tpu_custom_call.1} parent=1 // pred_fallthru
      _
    %v21 = vld [vmem:[#allocation2] sm:$0xff]
    %v22 = vld [vmem:[#allocation2 + $0x8] sm:$0xff]
    %v23 = vmul.f32 %v21, 0.5
    %v24 = vmul.f32 %v22, 0.5
    %v25 = vtanh.pop %v23
    %v26 = vtanh.pop %v24
    %v27 = vmul.f32 %v25, 0.5
    %v28 = vmul.f32 %v26, 0.5
    %v29 = vadd.f32 %v27, 0.5
    %v30 = vadd.f32 %v28, 0.5
    %v31 = vmul.f32 %v21, %v29
    %v32 = vmul.f32 %v22, %v30
    %33 = vst [vmem:[#allocation5] sm:$0xff] %v31
    %34 = vst [vmem:[#allocation5 + $0x8] sm:$0xff] %v32
    // Predicated region
    $region10: #{tpu_custom_call.1} parent=1 // pred_check
      _
    $region11: #{tpu_custom_call.1} parent=1 // pred_check_branch
      %36 = sbr.rel (0) target = $region13
    $region12: #{tpu_custom_call.1} parent=1 // pred_region
      %s38 = ssub.s32 256, 256
      %39 = vsyncadd [#allocation4], %s38
      %s41 = sshll.u32 [#allocation5], 4
      %s42 = int_to_ptr.vmem [resolvable:$true] %s41
      %44 = dma.vmem_to_hbm [thread:$0]  %s42, 256, %s1, [#allocation4]
    $region13: #{tpu_custom_call.1} parent=1 // pred_fallthru
      _
    // Predicated region
    $region14: #{tpu_custom_call.1} parent=1 // pred_check
      _
    $region15: #{tpu_custom_call.1} parent=1 // pred_check_branch
      %46 = sbr.rel (0) target = $region17
    $region16: #{tpu_custom_call.1} parent=1 // pred_region
      %47 = dma.done [#allocation4], 256
    $region17: #{tpu_custom_call.1} parent=1 // pred_fallthru
      _
    %48 = vsyncpa [#allocation3], 1
    %49 = vsyncpa [#allocation4], 1

</llo_original>
